<compile_context>
chip_gen: v5e
topology: v5e:2x2
jax: 0.10.0
libtpu: 0.0.40
codegen_flags: <defaults>
</compile_context>

<pallas_src>
import jax
import jax.numpy as jnp
from jax.experimental import pallas as pl
from jax.experimental.pallas import tpu as pltpu


def _round_up(x, m):
    return ((x + m - 1) // m) * m


def _sigmoid(x):
    return 1.0 / (1.0 + jnp.exp(-x))


# ---------------------------------------------------------------------------
# Kernel 1: batched input projection  gx = x @ W_ih^T + b_ih   (M = S*B rows)
# ---------------------------------------------------------------------------
def _x_proj_kernel(x_ref, w_ref, b_ref, o_ref):
    # x_ref: (TILE_M, F)  w_ref: (F, 3H)  b_ref: (1, 3H)  o_ref: (TILE_M, 3H)
    acc = jnp.dot(x_ref[...], w_ref[...], preferred_element_type=jnp.float32)
    o_ref[...] = (acc + b_ref[...]).astype(o_ref.dtype)


def _x_projection(x2d, w_t, b2d):
    """x2d: [M, F] f32; w_t: [F, N] (pre-transposed); b2d: [1, N]. Returns [M, N]."""
    M, F = x2d.shape
    N = w_t.shape[1]

    # Tile M so the grid pipelines (prefetch i+1 while computing i) and can be
    # sharded across TensorCores. Tiny M degenerates to a single full block.
    tile_m = min(512, _round_up(M, 8))
    m_pad = _round_up(M, tile_m)
    if m_pad != M:
        x2d = jnp.pad(x2d, ((0, m_pad - M), (0, 0)))
    grid_m = m_pad // tile_m

    out = pl.pallas_call(
        _x_proj_kernel,
        out_shape=jax.ShapeDtypeStruct((m_pad, N), jnp.float32),
        grid_spec=pltpu.PrefetchScalarGridSpec(
            num_scalar_prefetch=0,
            grid=(grid_m,),
            in_specs=[
                pl.BlockSpec((tile_m, F), lambda i: (i, 0)),   # streams
                pl.BlockSpec((F, N), lambda i: (0, 0)),        # resident weight
                pl.BlockSpec((1, N), lambda i: (0, 0)),        # resident bias
            ],
            out_specs=pl.BlockSpec((tile_m, N), lambda i: (i, 0)),
        ),
        compiler_params=pltpu.CompilerParams(
            dimension_semantics=("parallel",)),
        cost_estimate=pl.CostEstimate(
            flops=2 * m_pad * F * N,
            transcendentals=0,
            bytes_accessed=4 * (m_pad * F + F * N + N + m_pad * N),
        ),
    )(x2d, w_t, b2d)
    return out[:M]


# ---------------------------------------------------------------------------
# Kernel 2: sequential recurrence over time with h resident in VMEM scratch
# ---------------------------------------------------------------------------
def _gru_recurrence_kernel(gx_ref, whh_ref, bhh_ref, out_ref, h_ref):
    # gx_ref: (1, B, 3H)  whh_ref: (H, 3H)  bhh_ref: (1, 3H)
    # out_ref: (1, B, H)  h_ref: VMEM scratch (B, H), carried across grid steps.
    t = pl.program_id(0)
    H = h_ref.shape[-1]

    @pl.when(t == 0)
    def _():
        h_ref[...] = jnp.zeros_like(h_ref)

    h_prev = h_ref[...]                                             # [B, H]
    gh = jnp.dot(h_prev, whh_ref[...],
                 preferred_element_type=jnp.float32) + bhh_ref[...]  # [B, 3H]
    gx = gx_ref[0]                                                   # [B, 3H]

    # PyTorch gate order: r, z, n
    r = _sigmoid(gx[:, 0:H] + gh[:, 0:H])
    z = _sigmoid(gx[:, H:2 * H] + gh[:, H:2 * H])
    n = jnp.tanh(gx[:, 2 * H:3 * H] + r * gh[:, 2 * H:3 * H])
    h_new = (1.0 - z) * n + z * h_prev

    h_ref[...] = h_new
    out_ref[0] = h_new.astype(out_ref.dtype)


def _gru_recurrence(gx_tm, w_hh_t, b_hh_2d):
    """gx_tm: [S, B, 3H] time-major input gates; w_hh_t: [H, 3H]; b_hh_2d: [1, 3H].
    Returns time-major hidden states [S, B, H] (h0 = 0)."""
    S, B, N3 = gx_tm.shape
    H = w_hh_t.shape[0]

    out = pl.pallas_call(
        _gru_recurrence_kernel,
        out_shape=jax.ShapeDtypeStruct((S, B, H), jnp.float32),
        grid_spec=pltpu.PrefetchScalarGridSpec(
            num_scalar_prefetch=0,
            grid=(S,),
            in_specs=[
                pl.BlockSpec((1, B, N3), lambda t: (t, 0, 0)),  # gx_t streams
                pl.BlockSpec((H, N3), lambda t: (0, 0)),        # resident W_hh^T
                pl.BlockSpec((1, N3), lambda t: (0, 0)),        # resident b_hh
            ],
            out_specs=pl.BlockSpec((1, B, H), lambda t: (t, 0, 0)),
            scratch_shapes=[pltpu.VMEM((B, H), jnp.float32)],
        ),
        compiler_params=pltpu.CompilerParams(
            dimension_semantics=("arbitrary",)),  # sequential time dependence
        cost_estimate=pl.CostEstimate(
            flops=2 * S * B * H * N3 + 10 * S * B * H,
            transcendentals=3 * S * B * H,
            bytes_accessed=4 * (S * B * N3 + H * N3 + N3 + S * B * H),
        ),
    )(gx_tm, w_hh_t, b_hh_2d)
    return out


# ---------------------------------------------------------------------------
# GRULayer.forward equivalent
# ---------------------------------------------------------------------------
def gru_layer_forward(x, params):
    """x: [B, S, in_dim] (batch_first, like the PyTorch module).
    params: list of (w_ih [3H, in_l], w_hh [3H, H], b_ih [3H], b_hh [3H]) per layer.
    Returns (out[-1, :, :], h[-1, :, :]) exactly like GRULayer.forward."""
    B, S, _ = x.shape
    layer_in_tm = jnp.transpose(x.astype(jnp.float32), (1, 0, 2))  # [S, B, in]

    for (w_ih, w_hh, b_ih, b_hh) in params:
        H = w_hh.shape[1]
        in_l = w_ih.shape[1]
        M = S * B

        x_flat = layer_in_tm.reshape(M, in_l)
        # Batched-over-time input projection (weights pre-transposed to [in, 3H]).
        gx = _x_projection(x_flat, w_ih.T, b_ih.reshape(1, 3 * H))   # [M, 3H]
        gx_tm = gx.reshape(S, B, 3 * H)
        # Sequential recurrence.
        layer_in_tm = _gru_recurrence(gx_tm, w_hh.T, b_hh.reshape(1, 3 * H))
        # TODO(synk): inter-layer dropout is training-only in nn.GRU; inference
        # semantics (no dropout) are implemented here.

    out_tm = layer_in_tm                 # [S, B, H] of the last layer
    out_last_batch = out_tm[:, -1, :]    # == torch out[-1, :, :]  -> [S, H]
    h_last_layer = out_tm[-1, :, :]      # == torch h[-1, :, :]    -> [B, H]
    return out_last_batch, h_last_layer


# ---------------------------------------------------------------------------
# Pure-JAX reference (mirrors torch.nn.GRU math) for the self-test
# ---------------------------------------------------------------------------
def _gru_reference(x_bf, params):
    B, S, _ = x_bf.shape
    layer_in = x_bf.astype(jnp.float32)
    h_last = None
    for (w_ih, w_hh, b_ih, b_hh) in params:
        H = w_hh.shape[1]
        h = jnp.zeros((B, H), jnp.float32)
        outs = []
        for t in range(S):
            x_t = layer_in[:, t, :]
            gi = x_t @ w_ih.T + b_ih
            gh = h @ w_hh.T + b_hh
            r = jax.nn.sigmoid(gi[:, :H] + gh[:, :H])
            z = jax.nn.sigmoid(gi[:, H:2 * H] + gh[:, H:2 * H])
            n = jnp.tanh(gi[:, 2 * H:] + r * gh[:, 2 * H:])
            h = (1.0 - z) * n + z * h
            outs.append(h)
        layer_in = jnp.stack(outs, axis=1)   # [B, S, H]
        h_last = h
    out = layer_in
    return out[-1, :, :], h_last


if __name__ == "__main__":
    key = jax.random.PRNGKey(0)

    batch, seq = 2, 8
    in_dim, hid_dim, n_layers, dropout = 32, 32, 2, 0.1  # dropout unused at inference

    k_x, key = jax.random.split(key)
    x = jax.random.normal(k_x, (batch, seq, in_dim), dtype=jnp.float32)

    # Parameters mimicking nn.GRU init: uniform(-1/sqrt(H), 1/sqrt(H)).
    bound = 1.0 / (hid_dim ** 0.5)
    params = []
    for layer in range(n_layers):
        layer_in_dim = in_dim if layer == 0 else hid_dim
        k1, k2, k3, k4, key = jax.random.split(key, 5)
        w_ih = jax.random.uniform(k1, (3 * hid_dim, layer_in_dim),
                                  minval=-bound, maxval=bound, dtype=jnp.float32)
        w_hh = jax.random.uniform(k2, (3 * hid_dim, hid_dim),
                                  minval=-bound, maxval=bound, dtype=jnp.float32)
        b_ih = jax.random.uniform(k3, (3 * hid_dim,),
                                  minval=-bound, maxval=bound, dtype=jnp.float32)
        b_hh = jax.random.uniform(k4, (3 * hid_dim,),
                                  minval=-bound, maxval=bound, dtype=jnp.float32)
        params.append((w_ih, w_hh, b_ih, b_hh))

    out, h = gru_layer_forward(x, params)
    out = jax.block_until_ready(out)
    h = jax.block_until_ready(h)

    out_ref, h_ref = _gru_reference(x, params)

    assert out.shape == (seq, hid_dim), out.shape   # torch out[-1, :, :]
    assert h.shape == (batch, hid_dim), h.shape     # torch h[-1, :, :]
    assert jnp.allclose(out, out_ref, atol=1e-2, rtol=1e-2)
    assert jnp.allclose(h, h_ref, atol=1e-2, rtol=1e-2)

    print("KERNEL_OK")
</pallas_src>

<mosaic_0001>
module attributes {stable_mosaic.version = 11 : i64} {
  func.func @_x_proj_kernel(%arg0: i32, %arg1: memref<16x32xf32, #tpu.memory_space<vmem>>, %arg2: memref<32x96xf32, #tpu.memory_space<vmem>>, %arg3: memref<1x96xf32, #tpu.memory_space<vmem>>, %arg4: memref<16x96xf32, #tpu.memory_space<vmem>>) attributes {dimension_semantics = [#tpu.dimension_semantics<parallel>], iteration_bounds = array<i64: 1>, scalar_prefetch = 0 : i64, scratch_operands = 0 : i64, tpu.core_type = #tpu.core_type<tc>, window_params = [{transform_indices = @transform_0, window_bounds = array<i64: 16, 32>}, {pipeline_mode = #tpu.pipeline_mode<synchronous>, transform_indices = @transform_1, window_bounds = array<i64: 32, 96>}, {pipeline_mode = #tpu.pipeline_mode<synchronous>, transform_indices = @transform_2, window_bounds = array<i64: 1, 96>}, {transform_indices = @transform_3, window_bounds = array<i64: 16, 96>}]} {
    %c0 = arith.constant 0 : index
    %c0_0 = arith.constant 0 : index
    %0 = vector.load %arg1[%c0, %c0_0] : memref<16x32xf32, #tpu.memory_space<vmem>>, vector<16x32xf32>
    %c0_1 = arith.constant 0 : index
    %c0_2 = arith.constant 0 : index
    %1 = vector.load %arg2[%c0_1, %c0_2] : memref<32x96xf32, #tpu.memory_space<vmem>>, vector<32x96xf32>
    %cst = arith.constant dense<0.000000e+00> : vector<16x96xf32>
    %2 = tpu.matmul %0, %1, %cst {dimension_numbers = #tpu.dot_dimension_numbers<[1], [0], [0], [1], [0, 0, 1, 1], [], []>} : vector<16x32xf32>, vector<32x96xf32>, vector<16x96xf32> -> vector<16x96xf32>
    %c0_3 = arith.constant 0 : index
    %c0_4 = arith.constant 0 : index
    %3 = vector.load %arg3[%c0_3, %c0_4] : memref<1x96xf32, #tpu.memory_space<vmem>>, vector<1x96xf32>
    %4 = vector.broadcast %3 : vector<1x96xf32> to vector<16x96xf32>
    %5 = arith.addf %2, %4 : vector<16x96xf32>
    %c0_5 = arith.constant 0 : index
    %c0_6 = arith.constant 0 : index
    %6 = vector.load %arg4[%c0_5, %c0_6] : memref<16x96xf32, #tpu.memory_space<vmem>>, vector<16x96xf32>
    tpu.vector_store %arg4[%c0_5, %c0_6], %5 {strides = array<i32>} : memref<16x96xf32, #tpu.memory_space<vmem>>, vector<16x96xf32>,
    return
  }
  func.func @transform_0(%arg0: i32) -> (i32, i32) {
    %c0_i32 = arith.constant 0 : i32
    %c0_i32_0 = arith.constant 0 : i32
    return %arg0, %c0_i32 : i32, i32
  }
  func.func @transform_1(%arg0: i32) -> (i32, i32) {
    %c0_i32 = arith.constant 0 : i32
    %c0_i32_0 = arith.constant 0 : i32
    %c0_i32_1 = arith.constant 0 : i32
    return %c0_i32, %c0_i32_0 : i32, i32
  }
  func.func @transform_2(%arg0: i32) -> (i32, i32) {
    %c0_i32 = arith.constant 0 : i32
    %c0_i32_0 = arith.constant 0 : i32
    %c0_i32_1 = arith.constant 0 : i32
    return %c0_i32, %c0_i32_0 : i32, i32
  }
  func.func @transform_3(%arg0: i32) -> (i32, i32) {
    %c0_i32 = arith.constant 0 : i32
    %c0_i32_0 = arith.constant 0 : i32
    return %arg0, %c0_i32 : i32, i32
  }
}

</mosaic_0001>

<llo_original>
// kernel: tpu_custom_call.1
$region0: #{tpu_custom_call.1}
  #allocation0 [shape = 'u32[]', space=smem, size = 0x4, offset = 0x4, fixed_abs, tag = 'smem constant byte address 0x4 - core index']
  #allocation1 [shape = 'u32[72,128]{1,0:T(1,128)}', space=vmem, size = 0x9000, scoped, tag = 'internal scratch']
  %s0 = inlined_call_operand.hbm [shape: f32[16,32], index: 0, kind: input, shape index: {}]
  %s1 = inlined_call_operand.hbm [shape: f32[32,96], index: 1, kind: input, shape index: {}]
  %s2 = inlined_call_operand.vmem [shape: f32[1,96], index: 2, kind: input, shape index: {}]
  %s3 = inlined_call_operand.hbm [shape: f32[16,96], index: 3, kind: output, shape index: {}]
  %s4 = sld [smem:[#allocation0]]
  $region30: #{tpu_custom_call.1} parent=0
    _
  %s6 = ssub.s32 1, %s4
  %s7 = scalar_select 0, %s6, %s4
  $region1: #{tpu_custom_call.1} parent=0
    #allocation2 [shape = 'u8[8192]{0}', space=vmem, size = 0x2000, scoped, tag = 'input window, operand 0, single buffered']
    #allocation3 [shape = 's32[1]{0}', space=sflag, size = 0x4, scoped, tag = 'scoped memory for tpu_custom_call.1']
    #allocation4 [shape = 's32[1]{0}', space=sflag, size = 0x4, scoped, tag = 'scoped memory for tpu_custom_call.1']
    #allocation5 [shape = 'u8[16384]{0}', space=vmem, size = 0x4000, scoped, tag = 'input window, operand 1, single buffered']
    #allocation6 [shape = 's32[1]{0}', space=sflag, size = 0x4, scoped, tag = 'scoped memory for tpu_custom_call.1']
    #allocation7 [shape = 'u8[8192]{0}', space=vmem, size = 0x2000, scoped, tag = 'output window, operand 0, single buffered']
    %8 = vsyncpa [#allocation3], 0
    %9 = vsyncpa [#allocation6], 0
    %10 = vsyncpa [#allocation4], 0
    // Predicated region
    $region2: #{tpu_custom_call.1} parent=1 // pred_check
      _
    $region3: #{tpu_custom_call.1} parent=1 // pred_check_branch
      %12 = sbr.rel (0) target = $region5
    $region4: #{tpu_custom_call.1} parent=1 // pred_region
      %14 = vsyncadd [#allocation3], 0
      %s15 = sshll.u32 %s0, 4
      %s16 = int_to_ptr.hbm [resolvable:$true] %s15
      %s17 = sshll.u32 [#allocation2], 4
      %s18 = int_to_ptr.vmem [resolvable:$true] %s17
      %23 = dma.hbm_to_vmem [thread:$0]  %s16, 256, %s18, [#allocation3], 128, 128, 8
    $region5: #{tpu_custom_call.1} parent=1 // pred_fallthru
      _
    // Predicated region
    $region6: #{tpu_custom_call.1} parent=1 // pred_check
      _
    $region7: #{tpu_custom_call.1} parent=1 // pred_check_branch
      %25 = sbr.rel (0) target = $region9
    $region8: #{tpu_custom_call.1} parent=1 // pred_region
      %27 = vsyncadd [#allocation6], 0
      %s28 = sshll.u32 %s1, 4
      %s29 = int_to_ptr.hbm [resolvable:$true] %s28
      %s30 = sshll.u32 [#allocation5], 4
      %s31 = int_to_ptr.vmem [resolvable:$true] %s30
      %36 = dma.hbm_to_vmem [thread:$0]  %s29, 512, %s31, [#allocation6], 128, 128, 8
    $region9: #{tpu_custom_call.1} parent=1 // pred_fallthru
      _
    // Predicated region
    $region10: #{tpu_custom_call.1} parent=1 // pred_check
      _
    $region11: #{tpu_custom_call.1} parent=1 // pred_check_branch
      %38 = sbr.rel (0) target = $region13
    $region12: #{tpu_custom_call.1} parent=1 // pred_region
      _
    $region13: #{tpu_custom_call.1} parent=1 // pred_fallthru
      _
    // Predicated region
    $region14: #{tpu_custom_call.1} parent=1 // pred_check
      _
    $region15: #{tpu_custom_call.1} parent=1 // pred_check_branch
      %40 = sbr.rel (0) target = $region17
    $region16: #{tpu_custom_call.1} parent=1 // pred_region
      %42 = dma.done [#allocation3], 256
    $region17: #{tpu_custom_call.1} parent=1 // pred_fallthru
      _
    // Predicated region
    $region18: #{tpu_custom_call.1} parent=1 // pred_check
      _
    $region19: #{tpu_custom_call.1} parent=1 // pred_check_branch
      %44 = sbr.rel (0) target = $region21
    $region20: #{tpu_custom_call.1} parent=1 // pred_region
      %46 = dma.done [#allocation6], 512
    $region21: #{tpu_custom_call.1} parent=1 // pred_fallthru
      _
    %v47 = vld [vmem:[#allocation2] sm:$0xff]
    %v48 = vld [vmem:[#allocation2 + $0x8] sm:$0xff]
    %v49 = vld [vmem:[#allocation5] sm:$0xff]
    %v50 = vld [vmem:[#allocation5 + $0x8] sm:$0xff]
    %v51 = vld [vmem:[#allocation5 + $0x10] sm:$0xff]
    %v52 = vld [vmem:[#allocation5 + $0x18] sm:$0xff]
    %v53 = vld [vmem:[%s2] sm:$0x1]
    %v55 = vperm.slane %v53, 0
    %vm57 = vcmask 261120
    %v59 = vsel %vm57, %v47, 0
    %v62 = vsel %vm57, %v48, 0
    %64 = vmatpush.msra.mxu0 0.0
    %65 = vmatpush.msra.mxu0 0.0
    %66 = vmatpush.msra.mxu0 0.0
    %67 = vmatpush.msra.mxu0 0.0
    %68 = vmatpush.msra.mxu0 0.0
    %69 = vmatpush.msra.mxu0 0.0
    %70 = vmatpush.msra.mxu0 0.0
    %71 = vmatpush.msra.mxu0 0.0
    %72 = vmatpush.msra.mxu0 0.0
    %73 = vmatpush.msra.mxu0 0.0
    %74 = vmatpush.msra.mxu0 0.0
    %75 = vmatpush.msra.mxu0 0.0
    %76 = vmatpush.msra.mxu0 %v52
    %77 = vmatpush.msra.mxu0 %v51
    %78 = vmatpush.msra.mxu0 %v50
    %79 = vmatpush.msra.mxu0 %v49
    %80 = vmatmul.f32.gmra.mxu0 %v59
    %v81 = vpop.f32.mrf.mxu0
    %v82 = vadd.f32 %v55, %v81
    %83 = vmatmul.f32.gmra.mxu0 %v62
    %v84 = vpop.f32.mrf.mxu0
    %v85 = vadd.f32 %v55, %v84
    %86 = vdwg.mxu0
    %vm87 = vcmask 785408
    %88 = vst.msk [vmem:[#allocation7] sm:$0xff] %vm87, %v82
    %89 = vst.msk [vmem:[#allocation7 + $0x8] sm:$0xff] %vm87, %v85
    // Predicated region
    $region22: #{tpu_custom_call.1} parent=1 // pred_check
      _
    $region23: #{tpu_custom_call.1} parent=1 // pred_check_branch
      %91 = sbr.rel (0) target = $region25
    $region24: #{tpu_custom_call.1} parent=1 // pred_region
      %93 = vsyncadd [#allocation4], 0
      %s94 = sshll.u32 [#allocation7], 4
      %s95 = int_to_ptr.vmem [resolvable:$true] %s94
      %s96 = sshll.u32 %s3, 4
      %s97 = int_to_ptr.hbm [resolvable:$true] %s96
      %102 = dma.vmem_to_hbm [thread:$0]  %s95, 256, %s97, [#allocation4], 128, 128, 8
    $region25: #{tpu_custom_call.1} parent=1 // pred_fallthru
      _
    // Predicated region
    $region26: #{tpu_custom_call.1} parent=1 // pred_check
      _
    $region27: #{tpu_custom_call.1} parent=1 // pred_check_branch
      %104 = sbr.rel (0) target = $region29
    $region28: #{tpu_custom_call.1} parent=1 // pred_region
      %106 = dma.done [#allocation4], 256
    $region29: #{tpu_custom_call.1} parent=1 // pred_fallthru
      _
    %107 = vsyncpa [#allocation3], 1
    %108 = vsyncpa [#allocation6], 1
    %109 = vsyncpa [#allocation4], 1

</llo_original>
